<compile_context>
chip_gen: v7x
topology: tpu7x:2x2x1
jax: 0.10.0
libtpu: 0.0.40
codegen_flags: <defaults>
</compile_context>

<pallas_src>
import functools
import numpy as np
import jax
import jax.numpy as jnp
from jax.experimental import pallas as pl
from jax.experimental.pallas import tpu as pltpu


def _round_up(v, m):
    return ((v + m - 1) // m) * m


@functools.lru_cache(maxsize=8)
def _build_basis(T, K_tile, n_k, T_pad):
    """Fused real-DFT basis, shape (n_k, 2*K_tile, T_pad).

    Rows [0, K_tile) of each K-tile are cos(2*pi*k*t/T), rows
    [K_tile, 2*K_tile) are -sin(2*pi*k*t/T).  Padded frequency rows / time
    columns are zeroed (they multiply zero data or are sliced off later)."""
    K = T // 2 + 1
    K_tot = n_k * K_tile
    k = np.arange(K_tot, dtype=np.int64)[:, None]
    t = np.arange(T_pad, dtype=np.int64)[None, :]
    # Integer modular arithmetic first, then scale: exact phase for any T.
    ang = (2.0 * np.pi / T) * ((k * t) % T).astype(np.float64)
    cos = np.cos(ang)
    sin = -np.sin(ang)
    cos[K:, :] = 0.0
    sin[K:, :] = 0.0
    cos[:, T:] = 0.0
    sin[:, T:] = 0.0
    cos = cos.astype(np.float32).reshape(n_k, K_tile, T_pad)
    sin = sin.astype(np.float32).reshape(n_k, K_tile, T_pad)
    return np.concatenate([cos, sin], axis=1)            # (n_k, 2*K_tile, T_pad)


def _freq_decomp_kernel(w_ref, x_ref, o_ref, acc_ref):
    # w_ref:   (1, 2*K_tile, T_tile)  fused cos/-sin basis tile
    # x_ref:   (T_tile, N_tile)       slab of the (T, B*F) input matrix
    # o_ref:   (K_tile, N_tile)       magnitudes
    # acc_ref: (2*K_tile, N_tile)     f32 accumulator over the T reduction
    t_idx = pl.program_id(2)

    @pl.when(t_idx == 0)
    def _():
        acc_ref[...] = jnp.zeros_like(acc_ref)

    acc_ref[...] += jnp.dot(w_ref[0], x_ref[...],
                            preferred_element_type=jnp.float32)

    @pl.when(t_idx == pl.num_programs(2) - 1)
    def _():
        kt = o_ref.shape[0]                 # K_tile: multiple of 8 -> clean split
        re = acc_ref[:kt, :]
        im = acc_ref[kt:, :]
        o_ref[...] = jnp.sqrt(re * re + im * im).astype(o_ref.dtype)


def _pick_n_tile(N, K_tile, T_tile, budget_bytes):
    """Largest lane-dense N tile whose working set fits the VMEM budget."""
    n_cap = _round_up(N, 128)
    for cand in (2048, 1024, 512, 256, 128):
        nt = min(cand, n_cap)
        vmem = 4 * (2 * (2 * K_tile) * T_tile     # basis (double-buffered)
                    + 2 * T_tile * nt             # x     (double-buffered)
                    + 2 * K_tile * nt             # out   (double-buffered)
                    + (2 * K_tile) * nt)          # accumulator
        if vmem <= budget_bytes:
            return nt, vmem
    nt = 128
    vmem = 4 * (2 * (2 * K_tile) * T_tile + 2 * T_tile * nt
                + 2 * K_tile * nt + (2 * K_tile) * nt)
    return nt, vmem


def freq_decomp(x):
    """|rfft(x, axis=1)| for x of shape (B, T, F), computed on-TPU via Pallas."""
    B, T, F = x.shape
    K = T // 2 + 1
    N = B * F

    # --- tile sizes: 8-aligned K, 128-lane-dense N, T as the reduction axis ---
    K_tile = min(256, _round_up(K, 8))
    n_k = pl.cdiv(K, K_tile)
    if T <= 1024:
        T_tile, T_pad = T, T
    else:
        T_tile = 512
        T_pad = _round_up(T, T_tile)
    n_t = T_pad // T_tile

    budget = 40 * 2**20                      # safe on v5e/v6e (128 MiB) and v7x (64 MiB)
    N_tile, vmem_bytes = _pick_n_tile(N, K_tile, T_tile, budget)
    n_n = pl.cdiv(N, N_tile)
    N_pad = n_n * N_tile

    w = jnp.asarray(_build_basis(T, K_tile, n_k, T_pad))  # (n_k, 2*K_tile, T_pad)

    # Lane-dense (T, B*F) layout; pad to tile multiples with zeros.
    x2 = jnp.transpose(x.astype(jnp.float32), (1, 0, 2)).reshape(T, N)
    x2 = jnp.pad(x2, ((0, T_pad - T), (0, N_pad - N)))

    out2 = pl.pallas_call(
        _freq_decomp_kernel,
        out_shape=jax.ShapeDtypeStruct((n_k * K_tile, N_pad), jnp.float32),
        grid_spec=pltpu.PrefetchScalarGridSpec(
            num_scalar_prefetch=0,
            grid=(n_k, n_n, n_t),                          # reduction axis (T) last
            in_specs=[
                pl.BlockSpec((1, 2 * K_tile, T_tile), lambda k, n, t: (k, 0, t)),
                pl.BlockSpec((T_tile, N_tile), lambda k, n, t: (t, n)),
            ],
            out_specs=pl.BlockSpec((K_tile, N_tile), lambda k, n, t: (k, n)),
            scratch_shapes=[pltpu.VMEM((2 * K_tile, N_tile), jnp.float32)],
        ),
        compiler_params=pltpu.CompilerParams(
            dimension_semantics=("parallel", "parallel", "arbitrary"),
            vmem_limit_bytes=int(max(32 * 2**20, min(56 * 2**20, 2 * vmem_bytes))),
        ),
    )(w, x2)

    # Un-pad and restore (B, K, F): columns were flattened as b*F + f.
    return out2[:K, :N].reshape(K, B, F).transpose(1, 0, 2)


if __name__ == "__main__":
    key = jax.random.PRNGKey(0)

    # Primary check: batch=2, seq=16, features=8 (shapes implied by the module).
    B, T, F = 2, 16, 8
    x = jax.random.normal(key, (B, T, F), dtype=jnp.float32)
    out = jax.block_until_ready(freq_decomp(x))
    ref = jnp.abs(jnp.fft.rfft(x, axis=1))
    assert out.shape == ref.shape == (B, T // 2 + 1, F)
    np.testing.assert_allclose(np.asarray(out), np.asarray(ref),
                               rtol=1e-4, atol=1e-4)

    # Robustness check: odd sequence length.
    x2 = jax.random.normal(jax.random.PRNGKey(1), (2, 10, 8), dtype=jnp.float32)
    out2 = jax.block_until_ready(freq_decomp(x2))
    ref2 = jnp.abs(jnp.fft.rfft(x2, axis=1))
    np.testing.assert_allclose(np.asarray(out2), np.asarray(ref2),
                               rtol=1e-4, atol=1e-4)

    print("KERNEL_OK")
</pallas_src>

<mosaic_0001>
module attributes {stable_mosaic.version = 11 : i64} {
  func.func @_freq_decomp_kernel(%arg0: i32, %arg1: i32, %arg2: i32, %arg3: memref<1x32x16xf32, #tpu.memory_space<vmem>>, %arg4: memref<16x128xf32, #tpu.memory_space<vmem>>, %arg5: memref<16x128xf32, #tpu.memory_space<vmem>>, %arg6: memref<32x128xf32, #tpu.memory_space<vmem>>) attributes {dimension_semantics = [#tpu.dimension_semantics<parallel>, #tpu.dimension_semantics<parallel>, #tpu.dimension_semantics<arbitrary>], iteration_bounds = array<i64: 1, 1, 1>, scalar_prefetch = 0 : i64, scratch_operands = 1 : i64, tpu.core_type = #tpu.core_type<tc>, window_params = [{transform_indices = @transform_0, window_bounds = array<i64: 1, 32, 16>}, {transform_indices = @transform_1, window_bounds = array<i64: 16, 128>}, {transform_indices = @transform_2, window_bounds = array<i64: 16, 128>}]} {
    %c0_i32 = arith.constant 0 : i32
    %0 = arith.cmpi eq, %arg2, %c0_i32 : i32
    %1 = arith.extui %0 : i1 to i32
    %c0_i32_0 = arith.constant 0 : i32
    %2 = arith.cmpi ne, %1, %c0_i32_0 : i32
    scf.if %2 {
      %cst_11 = arith.constant 0.000000e+00 : f32
      %13 = vector.broadcast %cst_11 : f32 to vector<32x128xf32>
      %c0_12 = arith.constant 0 : index
      %c0_13 = arith.constant 0 : index
      %14 = vector.load %arg6[%c0_12, %c0_13] : memref<32x128xf32, #tpu.memory_space<vmem>>, vector<32x128xf32>
      tpu.vector_store %arg6[%c0_12, %c0_13], %13 {strides = array<i32>} : memref<32x128xf32, #tpu.memory_space<vmem>>, vector<32x128xf32>,
    } else {
    }
    %c0 = arith.constant 0 : index
    %c0_1 = arith.constant 0 : index
    %3 = vector.load %arg6[%c0, %c0_1] : memref<32x128xf32, #tpu.memory_space<vmem>>, vector<32x128xf32>
    %c0_2 = arith.constant 0 : index
    %c0_3 = arith.constant 0 : index
    %c0_4 = arith.constant 0 : index
    %4 = vector.load %arg3[%c0_2, %c0_3, %c0_4] : memref<1x32x16xf32, #tpu.memory_space<vmem>>, vector<1x32x16xf32>
    %5 = vector.shape_cast %4 : vector<1x32x16xf32> to vector<32x16xf32>
    %c0_5 = arith.constant 0 : index
    %c0_6 = arith.constant 0 : index
    %6 = vector.load %arg4[%c0_5, %c0_6] : memref<16x128xf32, #tpu.memory_space<vmem>>, vector<16x128xf32>
    %cst = arith.constant dense<0.000000e+00> : vector<32x128xf32>
    %7 = tpu.matmul %5, %6, %cst {dimension_numbers = #tpu.dot_dimension_numbers<[1], [0], [0], [1], [0, 0, 1, 1], [], []>} : vector<32x16xf32>, vector<16x128xf32>, vector<32x128xf32> -> vector<32x128xf32>
    %8 = arith.addf %3, %7 : vector<32x128xf32>
    %c0_7 = arith.constant 0 : index
    %c0_8 = arith.constant 0 : index
    %9 = vector.load %arg6[%c0_7, %c0_8] : memref<32x128xf32, #tpu.memory_space<vmem>>, vector<32x128xf32>
    tpu.vector_store %arg6[%c0_7, %c0_8], %8 {strides = array<i32>} : memref<32x128xf32, #tpu.memory_space<vmem>>, vector<32x128xf32>,
    %c0_i32_9 = arith.constant 0 : i32
    %10 = arith.cmpi eq, %arg2, %c0_i32_9 : i32
    %11 = arith.extui %10 : i1 to i32
    %c0_i32_10 = arith.constant 0 : i32
    %12 = arith.cmpi ne, %11, %c0_i32_10 : i32
    scf.if %12 {
      %c0_11 = arith.constant 0 : index
      %c0_12 = arith.constant 0 : index
      %13 = vector.load %arg6[%c0_11, %c0_12] : memref<32x128xf32, #tpu.memory_space<vmem>>, vector<16x128xf32>
      %c16 = arith.constant 16 : index
      %c0_13 = arith.constant 0 : index
      %14 = vector.load %arg6[%c16, %c0_13] : memref<32x128xf32, #tpu.memory_space<vmem>>, vector<16x128xf32>
      %15 = arith.mulf %13, %13 : vector<16x128xf32>
      %16 = arith.mulf %14, %14 : vector<16x128xf32>
      %17 = arith.addf %15, %16 : vector<16x128xf32>
      %18 = math.sqrt %17 : vector<16x128xf32>
      %c0_14 = arith.constant 0 : index
      %c0_15 = arith.constant 0 : index
      %19 = vector.load %arg5[%c0_14, %c0_15] : memref<16x128xf32, #tpu.memory_space<vmem>>, vector<16x128xf32>
      tpu.vector_store %arg5[%c0_14, %c0_15], %18 {strides = array<i32>} : memref<16x128xf32, #tpu.memory_space<vmem>>, vector<16x128xf32>,
    } else {
    }
    return
  }
  func.func @transform_0(%arg0: i32, %arg1: i32, %arg2: i32) -> (i32, i32, i32) {
    %c0_i32 = arith.constant 0 : i32
    %c0_i32_0 = arith.constant 0 : i32
    return %arg0, %c0_i32, %arg2 : i32, i32, i32
  }
  func.func @transform_1(%arg0: i32, %arg1: i32, %arg2: i32) -> (i32, i32) {
    %c0_i32 = arith.constant 0 : i32
    return %arg2, %arg1 : i32, i32
  }
  func.func @transform_2(%arg0: i32, %arg1: i32, %arg2: i32) -> (i32, i32) {
    %c0_i32 = arith.constant 0 : i32
    return %arg0, %arg1 : i32, i32
  }
}

</mosaic_0001>

<llo_original>
// kernel: tpu_custom_call.1
$region0: #{tpu_custom_call.1}
  #allocation0 [shape = 'u32[]', space=smem, size = 0x4, offset = 0x4, fixed_abs, tag = 'smem constant byte address 0x4 - core index']
  #allocation1 [shape = 'u32[144,128]{1,0:T(1,128)}', space=vmem, size = 0x12000, scoped, tag = 'internal scratch']
  #allocation2 [shape = 'f32[32,128]{1,0:T(8,128)}', space=vmem, size = 0x4000, scoped, tag = 'scratch operand']
  %s0 = inlined_call_operand.vmem [shape: f32[1,32,16], index: 0, kind: input, shape index: {}]
  %s1 = inlined_call_operand.vmem [shape: f32[16,128], index: 1, kind: input, shape index: {}]
  %s2 = inlined_call_operand.hbm [shape: f32[16,128], index: 2, kind: output, shape index: {}]
  %s3 = sld [smem:[#allocation0]]
  $region26: #{tpu_custom_call.1} parent=0
    _
  %s5 = ssub.s32 1, %s3
  %s6 = scalar_select 0, %s5, %s3
  $region1: #{tpu_custom_call.1} parent=0
    #allocation3 [shape = 'u8[8192]{0}', space=vmem, size = 0x2000, scoped, tag = 'output window, operand 0, single buffered']
    #allocation4 [shape = 's32[1]{0}', space=sflag, size = 0x4, scoped, tag = 'scoped memory for tpu_custom_call.1']
    %7 = vsyncpa [#allocation4], 0
    // Predicated region
    $region2: #{tpu_custom_call.1} parent=1 // pred_check
      _
    $region3: #{tpu_custom_call.1} parent=1 // pred_check_branch
      %9 = sbr.rel (0) target = $region5
    $region4: #{tpu_custom_call.1} parent=1 // pred_region
      _
    $region5: #{tpu_custom_call.1} parent=1 // pred_fallthru
      _
    // Predicated region
    $region6: #{tpu_custom_call.1} parent=1 // pred_check
      _
    $region7: #{tpu_custom_call.1} parent=1 // pred_check_branch
      %11 = sbr.rel (0) target = $region9
    $region8: #{tpu_custom_call.1} parent=1 // pred_region
      _
    $region9: #{tpu_custom_call.1} parent=1 // pred_fallthru
      _
    %p12 = scmp.eq.s32.totalorder 0, 0
    // Predicated region
    $region10: #{tpu_custom_call.1} parent=1 // pred_check
      %p13 = pneg %p12
    $region11: #{tpu_custom_call.1} parent=1 // pred_check_branch
      %15 = sbr.rel (%p13) target = $region13
    $region12: #{tpu_custom_call.1} parent=1 // pred_region
      %16 = vst [vmem:[#allocation2] sm:$0xff] 0.0
      %17 = vst [vmem:[#allocation2 + $0x8] sm:$0xff] 0.0
      %18 = vst [vmem:[#allocation2 + $0x10] sm:$0xff] 0.0
      %19 = vst [vmem:[#allocation2 + $0x18] sm:$0xff] 0.0
    $region13: #{tpu_custom_call.1} parent=1 // pred_fallthru
      _
    %v20 = vld [vmem:[#allocation2] sm:$0xff]
    %v21 = vld [vmem:[#allocation2 + $0x8] sm:$0xff]
    %v22 = vld [vmem:[#allocation2 + $0x10] sm:$0xff]
    %v23 = vld [vmem:[#allocation2 + $0x18] sm:$0xff]
    %v24 = vld [vmem:[%s0] sm:$0xff]
    %v25 = vld [vmem:[%s0 + $0x8] sm:$0xff]
    %v26 = vld [vmem:[%s0 + $0x10] sm:$0xff]
    %v27 = vld [vmem:[%s0 + $0x18] sm:$0xff]
    %v28 = vld [vmem:[%s1] sm:$0xff]
    %v29 = vld [vmem:[%s1 + $0x8] sm:$0xff]
    %vm30 = vcmask 130048
    %v32 = vsel %vm30, %v24, 0
    %v35 = vsel %vm30, %v25, 0
    %v38 = vsel %vm30, %v26, 0
    %v41 = vsel %vm30, %v27, 0
    %43 = vmatprep.subr.mxu0 0.0
    %44 = vmatpush1.msra.mxu0 %v28
    %45 = vmatprep.subr.mxu0 0.0
    %46 = vmatpush1.msra.mxu0 %v29
    %47 = vmatprep.subr.mxu0 0.0
    %48 = vmatpush1.msra.mxu0 0.0
    %49 = vmatprep.subr.mxu0 0.0
    %50 = vmatpush1.msra.mxu0 0.0
    %51 = vmatprep.subr.mxu0 0.0
    %52 = vmatpush1.msra.mxu0 0.0
    %53 = vmatprep.subr.mxu0 0.0
    %54 = vmatpush1.msra.mxu0 0.0
    %55 = vmatprep.subr.mxu0 0.0
    %56 = vmatpush1.msra.mxu0 0.0
    %57 = vmatprep.subr.mxu0 0.0
    %58 = vmatpush1.msra.mxu0 0.0
    %59 = vmatprep.subr.mxu0 0.0
    %60 = vmatpush1.msra.mxu0 0.0
    %61 = vmatprep.subr.mxu0 0.0
    %62 = vmatpush1.msra.mxu0 0.0
    %63 = vmatprep.subr.mxu0 0.0
    %64 = vmatpush1.msra.mxu0 0.0
    %65 = vmatprep.subr.mxu0 0.0
    %66 = vmatpush1.msra.mxu0 0.0
    %67 = vmatprep.subr.mxu0 0.0
    %68 = vmatpush1.msra.mxu0 0.0
    %69 = vmatprep.subr.mxu0 0.0
    %70 = vmatpush1.msra.mxu0 0.0
    %71 = vmatprep.subr.mxu0 0.0
    %72 = vmatpush1.msra.mxu0 0.0
    %73 = vmatprep.subr.mxu0 0.0
    %74 = vmatpush1.msra.mxu0 0.0
    %75 = vmatprep.subr.mxu0 0.0
    %76 = vmatpush1.msra.mxu0 0.0
    %77 = vmatprep.subr.mxu0 0.0
    %78 = vmatpush1.msra.mxu0 0.0
    %79 = vmatprep.subr.mxu0 0.0
    %80 = vmatpush1.msra.mxu0 0.0
    %81 = vmatprep.subr.mxu0 0.0
    %82 = vmatpush1.msra.mxu0 0.0
    %83 = vmatprep.subr.mxu0 0.0
    %84 = vmatpush1.msra.mxu0 0.0
    %85 = vmatprep.subr.mxu0 0.0
    %86 = vmatpush1.msra.mxu0 0.0
    %87 = vmatprep.subr.mxu0 0.0
    %88 = vmatpush1.msra.mxu0 0.0
    %89 = vmatprep.subr.mxu0 0.0
    %90 = vmatpush1.msra.mxu0 0.0
    %91 = vmatprep.subr.mxu0 0.0
    %92 = vmatpush1.msra.mxu0 0.0
    %93 = vmatprep.subr.mxu0 0.0
    %94 = vmatpush1.msra.mxu0 0.0
    %95 = vmatprep.subr.mxu0 0.0
    %96 = vmatpush1.msra.mxu0 0.0
    %97 = vmatprep.subr.mxu0 0.0
    %98 = vmatpush1.msra.mxu0 0.0
    %99 = vmatprep.subr.mxu0 0.0
    %100 = vmatpush1.msra.mxu0 0.0
    %101 = vmatprep.subr.mxu0 0.0
    %102 = vmatpush1.msra.mxu0 0.0
    %103 = vmatprep.subr.mxu0 0.0
    %104 = vmatpush1.msra.mxu0 0.0
    %105 = vmatprep.subr.mxu0 0.0
    %106 = vmatpush1.msra.mxu0 0.0
    %107 = vmatprep.mubr.f32.mxu0 0.0
    %108 = vmatmul.mubr.f32.gmra.mrb[0].mxu0 %v32
    %v109 = vpop.f32.mrb[0].mxu0
    %v110 = vadd.f32 0.0, %v109
    %v111 = vpop.f32.mrb[0].mxu0
    %112 = vmatprep.mubr.f32.mxu0 0.0
    %113 = vmatmul.mubr.f32.gmra.mrb[0].mxu0 %v35
    %v114 = vpop.f32.mrb[0].mxu0
    %v115 = vadd.f32 0.0, %v114
    %v116 = vpop.f32.mrb[0].mxu0
    %117 = vmatprep.mubr.f32.mxu0 0.0
    %118 = vmatmul.mubr.f32.gmra.mrb[0].mxu0 %v38
    %v119 = vpop.f32.mrb[0].mxu0
    %v120 = vadd.f32 0.0, %v119
    %v121 = vpop.f32.mrb[0].mxu0
    %122 = vmatprep.mubr.f32.mxu0 0.0
    %123 = vmatmul.mubr.f32.gmra.mrb[0].mxu0 %v41
    %v124 = vpop.f32.mrb[0].mxu0
    %v125 = vadd.f32 0.0, %v124
    %v126 = vpop.f32.mrb[0].mxu0
    %127 = vdwg.mxu0
    %v128 = vadd.f32 %v20, %v110
    %v129 = vadd.f32 %v21, %v115
    %v130 = vadd.f32 %v22, %v120
    %v131 = vadd.f32 %v23, %v125
    %132 = vst [vmem:[#allocation2] sm:$0xff] %v128
    %133 = vst [vmem:[#allocation2 + $0x8] sm:$0xff] %v129
    %134 = vst [vmem:[#allocation2 + $0x10] sm:$0xff] %v130
    %135 = vst [vmem:[#allocation2 + $0x18] sm:$0xff] %v131
    // Predicated region
    $region14: #{tpu_custom_call.1} parent=1 // pred_check
      %p136 = pneg %p12
    $region15: #{tpu_custom_call.1} parent=1 // pred_check_branch
      %138 = sbr.rel (%p136) target = $region17
    $region16: #{tpu_custom_call.1} parent=1 // pred_region
      %v139 = vld [vmem:[#allocation2] sm:$0xff]
      %v140 = vld [vmem:[#allocation2 + $0x8] sm:$0xff]
      %v141 = vld [vmem:[#allocation2 + $0x10] sm:$0xff]
      %v142 = vld [vmem:[#allocation2 + $0x18] sm:$0xff]
      %v143 = vmul.f32 %v139, %v139
      %v144 = vmul.f32 %v140, %v140
      %v145 = vmul.f32 %v141, %v141
      %v146 = vmul.f32 %v142, %v142
      %v147 = vadd.f32 %v143, %v145
      %v148 = vadd.f32 %v144, %v146
      %v149 = vrsqrt.pop %v147
      %v150 = vmul.f32 %v147, %v149
      %vm151 = vcmp.eq.f32.partialorder %v147, inf
      %v152 = vsel %vm151, %v147, %v150
      %vm153 = vcmp.eq.f32.partialorder %v147, 0.0
      %v154 = vand.u32 %v147, 2147483648
      %v155 = vsel %vm153, %v154, %v152
      %v156 = vrsqrt.pop %v148
      %v157 = vmul.f32 %v148, %v156
      %vm158 = vcmp.eq.f32.partialorder %v148, inf
      %v159 = vsel %vm158, %v148, %v157
      %vm160 = vcmp.eq.f32.partialorder %v148, 0.0
      %v161 = vand.u32 %v148, 2147483648
      %v162 = vsel %vm160, %v161, %v159
      %163 = vst [vmem:[#allocation3] sm:$0xff] %v155
      %164 = vst [vmem:[#allocation3 + $0x8] sm:$0xff] %v162
    $region17: #{tpu_custom_call.1} parent=1 // pred_fallthru
      _
    // Predicated region
    $region18: #{tpu_custom_call.1} parent=1 // pred_check
      _
    $region19: #{tpu_custom_call.1} parent=1 // pred_check_branch
      %166 = sbr.rel (0) target = $region21
    $region20: #{tpu_custom_call.1} parent=1 // pred_region
      %s168 = ssub.s32 256, 256
      %169 = vsyncadd [#allocation4], %s168
      %s170 = sshll.u32 [#allocation3], 4
      %s171 = int_to_ptr.vmem [resolvable:$true] %s170
      %176 = dma.vmem_to_hbm [thread:$0]  %s171, 256, %s2, [#allocation4], 128, 128, 8
    $region21: #{tpu_custom_call.1} parent=1 // pred_fallthru
      _
    // Predicated region
    $region22: #{tpu_custom_call.1} parent=1 // pred_check
      _
    $region23: #{tpu_custom_call.1} parent=1 // pred_check_branch
      %178 = sbr.rel (0) target = $region25
    $region24: #{tpu_custom_call.1} parent=1 // pred_region
      %179 = dma.done [#allocation4], 256
    $region25: #{tpu_custom_call.1} parent=1 // pred_fallthru
      _
    %180 = vsyncpa [#allocation4], 1

</llo_original>
